<compile_context>
chip_gen: v6e
topology: v6e:2x2x1
jax: 0.10.0
libtpu: 0.0.40
codegen_flags: <defaults>
</compile_context>

<pallas_src>
import math

import jax
import jax.numpy as jnp
from jax import lax
from jax.experimental import pallas as pl
from jax.experimental.pallas import tpu as pltpu


def _gelu_exact(x):
    # F.gelu default: 0.5 * x * (1 + erf(x / sqrt(2))).
    # NOTE: lax.erf lowers to a VPU polynomial (not a single EUP op); it stays
    # hidden while flops/element ~ 4H is large.  If a bundle dump ever shows
    # VALU as the binding slot (tiny H), switch to the tanh-form gelu.
    return 0.5 * x * (1.0 + lax.erf(x * (1.0 / math.sqrt(2.0))))


def gpt3_mlp_kernel(x_ref, w1_ref, b1_ref, w2_ref, b2_ref, o_ref, acc_ref):
    k = pl.program_id(1)

    # h_chunk = gelu(x @ W1[:, k-chunk] + b1[k-chunk])          [tm, tk] f32
    h = jnp.dot(x_ref[...], w1_ref[...], preferred_element_type=jnp.float32)
    h = _gelu_exact(h + b1_ref[...].astype(jnp.float32))

    # chunk contribution to the output tile (operands in weight dtype, f32 acc)
    contrib = jnp.dot(h.astype(w2_ref.dtype), w2_ref[...],
                      preferred_element_type=jnp.float32)

    @pl.when(k == 0)
    def _first():
        # First k-step: write directly (seeded with b2) -- no zero + "+=" RMW,
        # and b2 is added exactly once per output tile.
        acc_ref[...] = contrib + b2_ref[...].astype(jnp.float32)

    @pl.when(k > 0)
    def _accumulate():
        acc_ref[...] += contrib

    @pl.when(k == pl.num_programs(1) - 1)
    def _finalize():
        o_ref[...] = acc_ref[...].astype(o_ref.dtype)
        # TODO(synk): nn.Dropout is identity in eval mode; training-mode dropout
        # would use pltpu.prng_seed + pltpu.prng_random_bits masking here.


# ----------------------------- tile selection -------------------------------

def _choose_tile(requested, total, aligns):
    """Largest tile <= requested that divides `total` and is a multiple of one
    of `aligns` (coarsest first).  Falls back to the full extent (one block)
    only if no aligned divisor exists at all."""
    if total <= requested:
        return total
    for a in aligns:
        t = (requested // a) * a
        while t >= a:
            if total % t == 0:
                return t
            t -= a
    return total


def _tpu_generation():
    try:
        kind = jax.devices()[0].device_kind.lower()
    except Exception:
        return 6
    for gen in (7, 6, 5, 4):
        if any(tag in kind for tag in (f"v{gen}", f"{gen}x", f"{gen}e", f"{gen}p")):
            return gen
    return 6


def _vmem_capacity_bytes(gen):
    try:
        return int(pltpu.get_tpu_info().vmem_capacity_bytes)
    except Exception:
        # v7x: 64 MiB per TensorCore; v5e/v6e: 128 MiB.
        return (64 if gen >= 7 else 128) * 1024 * 1024


def _default_tiles(gen):
    # (tm, tk, m_aligns, k_aligns).  tm is the HBM-roofline knob (weights are
    # re-streamed n_m times, flops/weight-byte == tm); tk >= 256 keeps the
    # accumulator RMW off the single vector-store slot (v5e/v6e).
    if gen >= 7:        # 64 MiB VMEM, 3.2 TB/s HBM, 2 TCs, 256x256 MXU
        return 256, 256, (256, 128, 8), (256, 128)
    if gen == 6:        # 128 MiB VMEM, ~1.4 TB/s HBM, 256x256 MXU
        return 512, 512, (256, 128, 8), (256, 128)
    return 256, 512, (128, 8), (256, 128)   # v5e / older, 128x128 MXU


def _vmem_est(tm, tk, H, itemsize):
    """Conservative VMEM estimate (assumes double-buffered x/out so the
    non-Buffered fallback path also fits); includes gelu temporaries."""
    weights = 2 * 2 * H * tk * itemsize          # W1 + W2 k-chunks, 2 buffers
    biases = 2 * 8 * (tk + H) * itemsize         # (1, .) blocks pad to 8 sublanes
    x_out = 2 * 2 * tm * H * itemsize            # x tile + out tile
    acc = tm * H * 4                             # f32 accumulator scratch
    gelu_tmp = tm * tk * (4 + itemsize)          # f32 h chunk + cast back
    return weights + biases + x_out + acc + gelu_tmp


def _pick_tiles(M, H, H4, itemsize, gen, vmem_cap, tm_req=None, tk_req=None):
    tm_d, tk_d, m_aligns, k_aligns = _default_tiles(gen)
    tm = _choose_tile(tm_req or tm_d, M, m_aligns)
    tk = _choose_tile(tk_req or tk_d, H4, k_aligns)

    budget = int(0.85 * vmem_cap)
    # Shrink tk first (but not below 256), then tm, until the estimate fits.
    while _vmem_est(tm, tk, H, itemsize) > budget:
        if (tk > 256 and tk % 2 == 0 and (tk // 2) % 128 == 0
                and H4 % (tk // 2) == 0):
            tk //= 2
        elif (tm > 128 and tm % 2 == 0 and (tm // 2) % 8 == 0
                and M % (tm // 2) == 0):
            tm //= 2
        else:
            break

    # v7x has 2 TensorCores: make sure the "parallel" M axis has >= 2 tiles
    # when M allows it, so both cores get work.
    if gen >= 7 and M // tm < 2:
        half = _choose_tile(max(128, M // 2), M, m_aligns)
        if half < M:
            tm = half
    return tm, tk


# -------------------------------- wrapper ------------------------------------

def gpt3_mlp(hidden_states, w1, b1, w2, b2, *, tm=None, tk=None):
    """hidden_states: [B, S, H]; w1: [H, 4H]; b1: [4H]; w2: [4H, H]; b2: [H]."""
    B, S, H = hidden_states.shape
    H4 = w1.shape[1]
    M = B * S
    dtype = hidden_states.dtype
    itemsize = jnp.dtype(dtype).itemsize

    gen = _tpu_generation()
    vmem_cap = _vmem_capacity_bytes(gen)
    tm, tk = _pick_tiles(M, H, H4, itemsize, gen, vmem_cap, tm, tk)
    n_m, n_k = M // tm, H4 // tk

    x2d = hidden_states.reshape(M, H)
    # k-contiguous W1 layout [n_k, H, tk]: each k-chunk DMA is one dense slab.
    # (A raw (H, tk) column slice of row-major [H, 4H] has per-row runs of only
    # tk*itemsize bytes.)  In production store the weight pre-blocked; here we
    # reorder once per call.
    w1_blk = w1.reshape(H, n_k, tk).transpose(1, 0, 2)
    b1_2d = b1.reshape(1, H4)
    b2_2d = b2.reshape(1, H)

    vmem_est = _vmem_est(tm, tk, H, itemsize)
    vmem_limit = int(min(max(int(vmem_est * 1.25), 32 * 1024 * 1024),
                         int(0.9 * vmem_cap)))

    cost = pl.CostEstimate(
        flops=4 * M * H * H4,                 # two matmuls, 2*M*H*4H each
        transcendentals=M * H4,               # erf on the intermediate
        bytes_accessed=(2 * M * H * itemsize
                        + n_m * (w1.size + w2.size + H4 + H) * itemsize),
    )

    def run(single_buffer):
        # x / out block indices change only with i (once every n_k steps), so a
        # single pipeline buffer suffices; the reclaimed VMEM funds a larger tm.
        inv_kw = {"pipeline_mode": pl.Buffered(1)} if single_buffer else {}
        grid_spec = pltpu.PrefetchScalarGridSpec(
            num_scalar_prefetch=0,
            grid=(n_m, n_k),                                      # reduction last
            in_specs=[
                pl.BlockSpec((tm, H), lambda i, k: (i, 0), **inv_kw),   # x tile
                pl.BlockSpec((None, H, tk), lambda i, k: (k, 0, 0)),    # W1[k]
                pl.BlockSpec((1, tk), lambda i, k: (0, k)),             # b1[k]
                pl.BlockSpec((tk, H), lambda i, k: (k, 0)),             # W2[k]
                pl.BlockSpec((1, H), lambda i, k: (0, 0)),              # b2
            ],
            out_specs=pl.BlockSpec((tm, H), lambda i, k: (i, 0), **inv_kw),
            scratch_shapes=[pltpu.VMEM((tm, H), jnp.float32)],
        )
        return pl.pallas_call(
            gpt3_mlp_kernel,
            out_shape=jax.ShapeDtypeStruct((M, H), dtype),
            grid_spec=grid_spec,
            compiler_params=pltpu.CompilerParams(
                dimension_semantics=("parallel", "arbitrary"),
                vmem_limit_bytes=vmem_limit,
            ),
            cost_estimate=cost,
        )(x2d, w1_blk, b1_2d, w2, b2_2d)

    try:
        out = run(single_buffer=True)
    except Exception:
        # pipeline_mode=pl.Buffered(1) unsupported on this jax/Mosaic version:
        # fall back to default double-buffering (identical numerics).
        out = run(single_buffer=False)

    return out.reshape(B, S, H)


def init_params(key, hidden_size):
    """Deterministic nn.Linear-style init: U(-1/sqrt(fan_in), 1/sqrt(fan_in)).
    Weights stored transposed ([in, out]) for row-major MXU matmuls."""
    h, h4 = hidden_size, 4 * hidden_size
    k1, k2, k3, k4 = jax.random.split(key, 4)
    bound1 = 1.0 / math.sqrt(h)
    bound2 = 1.0 / math.sqrt(h4)
    w1 = jax.random.uniform(k1, (h, h4), jnp.float32, -bound1, bound1)
    b1 = jax.random.uniform(k2, (h4,), jnp.float32, -bound1, bound1)
    w2 = jax.random.uniform(k3, (h4, h), jnp.float32, -bound2, bound2)
    b2 = jax.random.uniform(k4, (h,), jnp.float32, -bound2, bound2)
    return w1, b1, w2, b2


if __name__ == "__main__":
    batch, seq, hidden = 2, 8, 32

    key = jax.random.PRNGKey(0)
    k_x, k_p = jax.random.split(key)
    x = jax.random.normal(k_x, (batch, seq, hidden), jnp.float32)
    w1, b1, w2, b2 = init_params(k_p, hidden)

    # --- fp32 path (tight numerical check; no in-kernel bf16 downcast here) ---
    out = jax.block_until_ready(gpt3_mlp(x, w1, b1, w2, b2))
    ref = jax.nn.gelu(x.reshape(-1, hidden) @ w1 + b1, approximate=False) @ w2 + b2
    ref = ref.reshape(batch, seq, hidden)
    assert out.shape == (batch, seq, hidden)
    assert jnp.allclose(out, ref, atol=1e-5, rtol=1e-5), "fp32 mismatch vs reference"

    # --- bf16 path (production dtype: bf16 MXU operands, f32 accumulation) ---
    xb = x.astype(jnp.bfloat16)
    w1b, b1b, w2b, b2b = (t.astype(jnp.bfloat16) for t in (w1, b1, w2, b2))
    outb = jax.block_until_ready(gpt3_mlp(xb, w1b, b1b, w2b, b2b))
    assert outb.dtype == jnp.bfloat16

    h32 = xb.reshape(-1, hidden).astype(jnp.float32) @ w1b.astype(jnp.float32)
    h32 = jax.nn.gelu(h32 + b1b.astype(jnp.float32), approximate=False)
    y32 = h32.astype(jnp.bfloat16).astype(jnp.float32) @ w2b.astype(jnp.float32)
    refb = (y32 + b2b.astype(jnp.float32)).reshape(batch, seq, hidden)
    assert jnp.allclose(outb.astype(jnp.float32), refb, atol=2e-2, rtol=2e-2), \
        "bf16 mismatch vs reference"

    print("KERNEL_OK")
</pallas_src>

<mosaic_0001>
module attributes {stable_mosaic.version = 11 : i64} {
  func.func @gpt3_mlp_kernel(%arg0: i32, %arg1: i32, %arg2: memref<16x32xf32, #tpu.memory_space<vmem>>, %arg3: memref<1x32x128xf32, #tpu.memory_space<vmem>>, %arg4: memref<1x128xf32, #tpu.memory_space<vmem>>, %arg5: memref<128x32xf32, #tpu.memory_space<vmem>>, %arg6: memref<1x32xf32, #tpu.memory_space<vmem>>, %arg7: memref<16x32xf32, #tpu.memory_space<vmem>>, %arg8: memref<16x32xf32, #tpu.memory_space<vmem>>) attributes {dimension_semantics = [#tpu.dimension_semantics<parallel>, #tpu.dimension_semantics<arbitrary>], iteration_bounds = array<i64: 1, 1>, scalar_prefetch = 0 : i64, scratch_operands = 1 : i64, tpu.core_type = #tpu.core_type<tc>, window_params = [{pipeline_mode = #tpu.pipeline_mode<synchronous>, transform_indices = @transform_0, window_bounds = array<i64: 16, 32>}, {transform_indices = @transform_1, window_bounds = array<i64: 1, 32, 128>}, {transform_indices = @transform_2, window_bounds = array<i64: 1, 128>}, {transform_indices = @transform_3, window_bounds = array<i64: 128, 32>}, {pipeline_mode = #tpu.pipeline_mode<synchronous>, transform_indices = @transform_4, window_bounds = array<i64: 1, 32>}, {pipeline_mode = #tpu.pipeline_mode<synchronous>, transform_indices = @transform_5, window_bounds = array<i64: 16, 32>}]} {
    %c0 = arith.constant 0 : index
    %c0_0 = arith.constant 0 : index
    %0 = vector.load %arg2[%c0, %c0_0] : memref<16x32xf32, #tpu.memory_space<vmem>>, vector<16x32xf32>
    %c0_1 = arith.constant 0 : index
    %c0_2 = arith.constant 0 : index
    %c0_3 = arith.constant 0 : index
    %1 = vector.load %arg3[%c0_1, %c0_2, %c0_3] : memref<1x32x128xf32, #tpu.memory_space<vmem>>, vector<1x32x128xf32>
    %2 = vector.shape_cast %1 : vector<1x32x128xf32> to vector<32x128xf32>
    %cst = arith.constant dense<0.000000e+00> : vector<16x128xf32>
    %3 = tpu.matmul %0, %2, %cst {dimension_numbers = #tpu.dot_dimension_numbers<[1], [0], [0], [1], [0, 0, 1, 1], [], []>} : vector<16x32xf32>, vector<32x128xf32>, vector<16x128xf32> -> vector<16x128xf32>
    %c0_4 = arith.constant 0 : index
    %c0_5 = arith.constant 0 : index
    %4 = vector.load %arg4[%c0_4, %c0_5] : memref<1x128xf32, #tpu.memory_space<vmem>>, vector<1x128xf32>
    %5 = vector.broadcast %4 : vector<1x128xf32> to vector<16x128xf32>
    %6 = arith.addf %3, %5 : vector<16x128xf32>
    %cst_6 = arith.constant 5.000000e-01 : f32
    %7 = vector.broadcast %cst_6 : f32 to vector<16x128xf32>
    %8 = arith.mulf %7, %6 : vector<16x128xf32>
    %cst_7 = arith.constant 0.707106769 : f32
    %9 = vector.broadcast %cst_7 : f32 to vector<16x128xf32>
    %10 = arith.mulf %6, %9 : vector<16x128xf32>
    %11 = math.erf %10 : vector<16x128xf32>
    %cst_8 = arith.constant 1.000000e+00 : f32
    %12 = vector.broadcast %cst_8 : f32 to vector<16x128xf32>
    %13 = arith.addf %12, %11 : vector<16x128xf32>
    %14 = arith.mulf %8, %13 : vector<16x128xf32>
    %c0_9 = arith.constant 0 : index
    %c0_10 = arith.constant 0 : index
    %15 = vector.load %arg5[%c0_9, %c0_10] : memref<128x32xf32, #tpu.memory_space<vmem>>, vector<128x32xf32>
    %cst_11 = arith.constant dense<0.000000e+00> : vector<16x32xf32>
    %16 = tpu.matmul %14, %15, %cst_11 {dimension_numbers = #tpu.dot_dimension_numbers<[1], [0], [0], [1], [0, 0, 1, 1], [], []>} : vector<16x128xf32>, vector<128x32xf32>, vector<16x32xf32> -> vector<16x32xf32>
    %c0_i32 = arith.constant 0 : i32
    %17 = arith.cmpi eq, %arg1, %c0_i32 : i32
    %18 = arith.extui %17 : i1 to i32
    %c0_i32_12 = arith.constant 0 : i32
    %19 = arith.cmpi ne, %18, %c0_i32_12 : i32
    scf.if %19 {
      %c0_17 = arith.constant 0 : index
      %c0_18 = arith.constant 0 : index
      %26 = vector.load %arg6[%c0_17, %c0_18] : memref<1x32xf32, #tpu.memory_space<vmem>>, vector<1x32xf32>
      %27 = vector.broadcast %26 : vector<1x32xf32> to vector<16x32xf32>
      %28 = arith.addf %16, %27 : vector<16x32xf32>
      %c0_19 = arith.constant 0 : index
      %c0_20 = arith.constant 0 : index
      %29 = vector.load %arg8[%c0_19, %c0_20] : memref<16x32xf32, #tpu.memory_space<vmem>>, vector<16x32xf32>
      tpu.vector_store %arg8[%c0_19, %c0_20], %28 {strides = array<i32>} : memref<16x32xf32, #tpu.memory_space<vmem>>, vector<16x32xf32>,
    } else {
    }
    %c0_i32_13 = arith.constant 0 : i32
    %20 = arith.cmpi sgt, %arg1, %c0_i32_13 : i32
    %21 = arith.extui %20 : i1 to i32
    %c0_i32_14 = arith.constant 0 : i32
    %22 = arith.cmpi ne, %21, %c0_i32_14 : i32
    scf.if %22 {
      %c0_17 = arith.constant 0 : index
      %c0_18 = arith.constant 0 : index
      %26 = vector.load %arg8[%c0_17, %c0_18] : memref<16x32xf32, #tpu.memory_space<vmem>>, vector<16x32xf32>
      %27 = arith.addf %26, %16 : vector<16x32xf32>
      %c0_19 = arith.constant 0 : index
      %c0_20 = arith.constant 0 : index
      %28 = vector.load %arg8[%c0_19, %c0_20] : memref<16x32xf32, #tpu.memory_space<vmem>>, vector<16x32xf32>
      tpu.vector_store %arg8[%c0_19, %c0_20], %27 {strides = array<i32>} : memref<16x32xf32, #tpu.memory_space<vmem>>, vector<16x32xf32>,
    } else {
    }
    %c0_i32_15 = arith.constant 0 : i32
    %23 = arith.cmpi eq, %arg1, %c0_i32_15 : i32
    %24 = arith.extui %23 : i1 to i32
    %c0_i32_16 = arith.constant 0 : i32
    %25 = arith.cmpi ne, %24, %c0_i32_16 : i32
    scf.if %25 {
      %c0_17 = arith.constant 0 : index
      %c0_18 = arith.constant 0 : index
      %26 = vector.load %arg8[%c0_17, %c0_18] : memref<16x32xf32, #tpu.memory_space<vmem>>, vector<16x32xf32>
      %c0_19 = arith.constant 0 : index
      %c0_20 = arith.constant 0 : index
      %27 = vector.load %arg7[%c0_19, %c0_20] : memref<16x32xf32, #tpu.memory_space<vmem>>, vector<16x32xf32>
      tpu.vector_store %arg7[%c0_19, %c0_20], %26 {strides = array<i32>} : memref<16x32xf32, #tpu.memory_space<vmem>>, vector<16x32xf32>,
    } else {
    }
    return
  }
  func.func @transform_0(%arg0: i32, %arg1: i32) -> (i32, i32) {
    %c0_i32 = arith.constant 0 : i32
    %c0_i32_0 = arith.constant 0 : i32
    return %arg0, %c0_i32 : i32, i32
  }
  func.func @transform_1(%arg0: i32, %arg1: i32) -> (i32, i32, i32) {
    %c0_i32 = arith.constant 0 : i32
    %c0_i32_0 = arith.constant 0 : i32
    %c0_i32_1 = arith.constant 0 : i32
    return %arg1, %c0_i32, %c0_i32_0 : i32, i32, i32
  }
  func.func @transform_2(%arg0: i32, %arg1: i32) -> (i32, i32) {
    %c0_i32 = arith.constant 0 : i32
    %c0_i32_0 = arith.constant 0 : i32
    return %c0_i32, %arg1 : i32, i32
  }
  func.func @transform_3(%arg0: i32, %arg1: i32) -> (i32, i32) {
    %c0_i32 = arith.constant 0 : i32
    %c0_i32_0 = arith.constant 0 : i32
    return %arg1, %c0_i32 : i32, i32
  }
  func.func @transform_4(%arg0: i32, %arg1: i32) -> (i32, i32) {
    %c0_i32 = arith.constant 0 : i32
    %c0_i32_0 = arith.constant 0 : i32
    %c0_i32_1 = arith.constant 0 : i32
    return %c0_i32, %c0_i32_0 : i32, i32
  }
  func.func @transform_5(%arg0: i32, %arg1: i32) -> (i32, i32) {
    %c0_i32 = arith.constant 0 : i32
    %c0_i32_0 = arith.constant 0 : i32
    return %arg0, %c0_i32 : i32, i32
  }
}

module attributes {stable_mosaic.version = 11 : i64} {
  func.func @gpt3_mlp_kernel(%arg0: i32, %arg1: i32, %arg2: memref<16x32xf32, #tpu.memory_space<vmem>>, %arg3: memref<1x32x128xf32, #tpu.memory_space<vmem>>, %arg4: memref<1x128xf32, #tpu.memory_space<vmem>>, %arg5: memref<128x32xf32, #tpu.memory_space<vmem>>, %arg6: memref<1x32xf32, #tpu.memory_space<vmem>>, %arg7: memref<16x32xf32, #tpu.memory_space<vmem>>, %arg8: memref<16x32xf32, #tpu.memory_space<vmem>>) attributes {dimension_semantics = [#tpu.dimension_semantics<parallel>, #tpu.dimension_semantics<arbitrary>], iteration_bounds = array<i64: 1, 1>, scalar_prefetch = 0 : i64, scratch_operands = 1 : i64, tpu.core_type = #tpu.core_type<tc>, window_params = [{transform_indices = @transform_0, window_bounds = array<i64: 16, 32>}, {transform_indices = @transform_1, window_bounds = array<i64: 1, 32, 128>}, {transform_indices = @transform_2, window_bounds = array<i64: 1, 128>}, {transform_indices = @transform_3, window_bounds = array<i64: 128, 32>}, {pipeline_mode = #tpu.pipeline_mode<synchronous>, transform_indices = @transform_4, window_bounds = array<i64: 1, 32>}, {transform_indices = @transform_5, window_bounds = array<i64: 16, 32>}]} {
    %c0 = arith.constant 0 : index
    %c0_0 = arith.constant 0 : index
    %0 = vector.load %arg2[%c0, %c0_0] : memref<16x32xf32, #tpu.memory_space<vmem>>, vector<16x32xf32>
    %c0_1 = arith.constant 0 : index
    %c0_2 = arith.constant 0 : index
    %c0_3 = arith.constant 0 : index
    %1 = vector.load %arg3[%c0_1, %c0_2, %c0_3] : memref<1x32x128xf32, #tpu.memory_space<vmem>>, vector<1x32x128xf32>
    %2 = vector.shape_cast %1 : vector<1x32x128xf32> to vector<32x128xf32>
    %cst = arith.constant dense<0.000000e+00> : vector<16x128xf32>
    %3 = tpu.matmul %0, %2, %cst {dimension_numbers = #tpu.dot_dimension_numbers<[1], [0], [0], [1], [0, 0, 1, 1], [], []>} : vector<16x32xf32>, vector<32x128xf32>, vector<16x128xf32> -> vector<16x128xf32>
    %c0_4 = arith.constant 0 : index
    %c0_5 = arith.constant 0 : index
    %4 = vector.load %arg4[%c0_4, %c0_5] : memref<1x128xf32, #tpu.memory_space<vmem>>, vector<1x128xf32>
    %5 = vector.broadcast %4 : vector<1x128xf32> to vector<16x128xf32>
    %6 = arith.addf %3, %5 : vector<16x128xf32>
    %cst_6 = arith.constant 5.000000e-01 : f32
    %7 = vector.broadcast %cst_6 : f32 to vector<16x128xf32>
    %8 = arith.mulf %7, %6 : vector<16x128xf32>
    %cst_7 = arith.constant 0.707106769 : f32
    %9 = vector.broadcast %cst_7 : f32 to vector<16x128xf32>
    %10 = arith.mulf %6, %9 : vector<16x128xf32>
    %11 = math.erf %10 : vector<16x128xf32>
    %cst_8 = arith.constant 1.000000e+00 : f32
    %12 = vector.broadcast %cst_8 : f32 to vector<16x128xf32>
    %13 = arith.addf %12, %11 : vector<16x128xf32>
    %14 = arith.mulf %8, %13 : vector<16x128xf32>
    %c0_9 = arith.constant 0 : index
    %c0_10 = arith.constant 0 : index
    %15 = vector.load %arg5[%c0_9, %c0_10] : memref<128x32xf32, #tpu.memory_space<vmem>>, vector<128x32xf32>
    %cst_11 = arith.constant dense<0.000000e+00> : vector<16x32xf32>
    %16 = tpu.matmul %14, %15, %cst_11 {dimension_numbers = #tpu.dot_dimension_numbers<[1], [0], [0], [1], [0, 0, 1, 1], [], []>} : vector<16x128xf32>, vector<128x32xf32>, vector<16x32xf32> -> vector<16x32xf32>
    %c0_i32 = arith.constant 0 : i32
    %17 = arith.cmpi eq, %arg1, %c0_i32 : i32
    %18 = arith.extui %17 : i1 to i32
    %c0_i32_12 = arith.constant 0 : i32
    %19 = arith.cmpi ne, %18, %c0_i32_12 : i32
    scf.if %19 {
      %c0_17 = arith.constant 0 : index
      %c0_18 = arith.constant 0 : index
      %26 = vector.load %arg6[%c0_17, %c0_18] : memref<1x32xf32, #tpu.memory_space<vmem>>, vector<1x32xf32>
      %27 = vector.broadcast %26 : vector<1x32xf32> to vector<16x32xf32>
      %28 = arith.addf %16, %27 : vector<16x32xf32>
      %c0_19 = arith.constant 0 : index
      %c0_20 = arith.constant 0 : index
      %29 = vector.load %arg8[%c0_19, %c0_20] : memref<16x32xf32, #tpu.memory_space<vmem>>, vector<16x32xf32>
      tpu.vector_store %arg8[%c0_19, %c0_20], %28 {strides = array<i32>} : memref<16x32xf32, #tpu.memory_space<vmem>>, vector<16x32xf32>,
    } else {
    }
    %c0_i32_13 = arith.constant 0 : i32
    %20 = arith.cmpi sgt, %arg1, %c0_i32_13 : i32
    %21 = arith.extui %20 : i1 to i32
    %c0_i32_14 = arith.constant 0 : i32
    %22 = arith.cmpi ne, %21, %c0_i32_14 : i32
    scf.if %22 {
      %c0_17 = arith.constant 0 : index
      %c0_18 = arith.constant 0 : index
      %26 = vector.load %arg8[%c0_17, %c0_18] : memref<16x32xf32, #tpu.memory_space<vmem>>, vector<16x32xf32>
      %27 = arith.addf %26, %16 : vector<16x32xf32>
      %c0_19 = arith.constant 0 : index
      %c0_20 = arith.constant 0 : index
      %28 = vector.load %arg8[%c0_19, %c0_20] : memref<16x32xf32, #tpu.memory_space<vmem>>, vector<16x32xf32>
      tpu.vector_store %arg8[%c0_19, %c0_20], %27 {strides = array<i32>} : memref<16x32xf32, #tpu.memory_space<vmem>>, vector<16x32xf32>,
    } else {
    }
    %c0_i32_15 = arith.constant 0 : i32
    %23 = arith.cmpi eq, %arg1, %c0_i32_15 : i32
    %24 = arith.extui %23 : i1 to i32
    %c0_i32_16 = arith.constant 0 : i32
    %25 = arith.cmpi ne, %24, %c0_i32_16 : i32
    scf.if %25 {
      %c0_17 = arith.constant 0 : index
      %c0_18 = arith.constant 0 : index
      %26 = vector.load %arg8[%c0_17, %c0_18] : memref<16x32xf32, #tpu.memory_space<vmem>>, vector<16x32xf32>
      %c0_19 = arith.constant 0 : index
      %c0_20 = arith.constant 0 : index
      %27 = vector.load %arg7[%c0_19, %c0_20] : memref<16x32xf32, #tpu.memory_space<vmem>>, vector<16x32xf32>
      tpu.vector_store %arg7[%c0_19, %c0_20], %26 {strides = array<i32>} : memref<16x32xf32, #tpu.memory_space<vmem>>, vector<16x32xf32>,
    } else {
    }
    return
  }
  func.func @transform_0(%arg0: i32, %arg1: i32) -> (i32, i32) {
    %c0_i32 = arith.constant 0 : i32
    %c0_i32_0 = arith.constant 0 : i32
    return %arg0, %c0_i32 : i32, i32
  }
  func.func @transform_1(%arg0: i32, %arg1: i32) -> (i32, i32, i32) {
    %c0_i32 = arith.constant 0 : i32
    %c0_i32_0 = arith.constant 0 : i32
    %c0_i32_1 = arith.constant 0 : i32
    return %arg1, %c0_i32, %c0_i32_0 : i32, i32, i32
  }
  func.func @transform_2(%arg0: i32, %arg1: i32) -> (i32, i32) {
    %c0_i32 = arith.constant 0 : i32
    %c0_i32_0 = arith.constant 0 : i32
    return %c0_i32, %arg1 : i32, i32
  }
  func.func @transform_3(%arg0: i32, %arg1: i32) -> (i32, i32) {
    %c0_i32 = arith.constant 0 : i32
    %c0_i32_0 = arith.constant 0 : i32
    return %arg1, %c0_i32 : i32, i32
  }
  func.func @transform_4(%arg0: i32, %arg1: i32) -> (i32, i32) {
    %c0_i32 = arith.constant 0 : i32
    %c0_i32_0 = arith.constant 0 : i32
    %c0_i32_1 = arith.constant 0 : i32
    return %c0_i32, %c0_i32_0 : i32, i32
  }
  func.func @transform_5(%arg0: i32, %arg1: i32) -> (i32, i32) {
    %c0_i32 = arith.constant 0 : i32
    %c0_i32_0 = arith.constant 0 : i32
    return %arg0, %c0_i32 : i32, i32
  }
}

</mosaic_0001>

<llo_original>
// kernel: tpu_custom_call.1
$region0: #{tpu_custom_call.1}
  #allocation0 [shape = 'u32[]', space=smem, size = 0x4, offset = 0x4, fixed_abs, tag = 'smem constant byte address 0x4 - core index']
  #allocation1 [shape = 'u32[144,128]{1,0:T(1,128)}', space=vmem, size = 0x12000, scoped, tag = 'internal scratch']
  #allocation2 [shape = 'f32[16,32]{1,0:T(8,128)}', space=vmem, size = 0x2000, scoped, tag = 'scratch operand']
  %s0 = inlined_call_operand.vmem [shape: f32[16,32], index: 0, kind: input, shape index: {}]
  %s1 = inlined_call_operand.vmem [shape: f32[1,32,128], index: 1, kind: input, shape index: {}]
  %s2 = inlined_call_operand.vmem [shape: f32[1,128], index: 2, kind: input, shape index: {}]
  %s3 = inlined_call_operand.vmem [shape: f32[128,32], index: 3, kind: input, shape index: {}]
  %s4 = inlined_call_operand.vmem [shape: f32[1,32], index: 4, kind: input, shape index: {}]
  %s5 = inlined_call_operand.hbm [shape: f32[16,32], index: 5, kind: output, shape index: {}]
  %s6 = sld [smem:[#allocation0]]
  $region42: #{tpu_custom_call.1} parent=0
    _
  %s8 = ssub.s32 1, %s6
  %s9 = scalar_select 0, %s8, %s6
  $region1: #{tpu_custom_call.1} parent=0
    #allocation3 [shape = 'u8[8192]{0}', space=vmem, size = 0x2000, scoped, tag = 'output window, operand 0, single buffered']
    #allocation4 [shape = 's32[1]{0}', space=sflag, size = 0x4, scoped, tag = 'scoped memory for tpu_custom_call.1']
    %10 = vsyncpa [#allocation4], 0
    // Predicated region
    $region2: #{tpu_custom_call.1} parent=1 // pred_check
      _
    $region3: #{tpu_custom_call.1} parent=1 // pred_check_branch
      %12 = sbr.rel (0) target = $region5
    $region4: #{tpu_custom_call.1} parent=1 // pred_region
      _
    $region5: #{tpu_custom_call.1} parent=1 // pred_fallthru
      _
    // Predicated region
    $region6: #{tpu_custom_call.1} parent=1 // pred_check
      _
    $region7: #{tpu_custom_call.1} parent=1 // pred_check_branch
      %14 = sbr.rel (0) target = $region9
    $region8: #{tpu_custom_call.1} parent=1 // pred_region
      _
    $region9: #{tpu_custom_call.1} parent=1 // pred_fallthru
      _
    // Predicated region
    $region10: #{tpu_custom_call.1} parent=1 // pred_check
      _
    $region11: #{tpu_custom_call.1} parent=1 // pred_check_branch
      %16 = sbr.rel (0) target = $region13
    $region12: #{tpu_custom_call.1} parent=1 // pred_region
      _
    $region13: #{tpu_custom_call.1} parent=1 // pred_fallthru
      _
    // Predicated region
    $region14: #{tpu_custom_call.1} parent=1 // pred_check
      _
    $region15: #{tpu_custom_call.1} parent=1 // pred_check_branch
      %18 = sbr.rel (0) target = $region17
    $region16: #{tpu_custom_call.1} parent=1 // pred_region
      _
    $region17: #{tpu_custom_call.1} parent=1 // pred_fallthru
      _
    // Predicated region
    $region18: #{tpu_custom_call.1} parent=1 // pred_check
      _
    $region19: #{tpu_custom_call.1} parent=1 // pred_check_branch
      %20 = sbr.rel (0) target = $region21
    $region20: #{tpu_custom_call.1} parent=1 // pred_region
      _
    $region21: #{tpu_custom_call.1} parent=1 // pred_fallthru
      _
    %v21 = vld [vmem:[%s0] sm:$0xff]
    %v22 = vld [vmem:[%s0 + $0x8] sm:$0xff]
    %v23 = vld [vmem:[%s1] sm:$0xff]
    %v24 = vld [vmem:[%s1 + $0x8] sm:$0xff]
    %v25 = vld [vmem:[%s1 + $0x10] sm:$0xff]
    %v26 = vld [vmem:[%s1 + $0x18] sm:$0xff]
    %v27 = vld [vmem:[%s2] sm:$0x1]
    %v29 = vlaneseq
    %v30 = vshrl.u32 %v29, 7
    %v31 = vsub.s32 0, %v30
    %v32 = vrot.slane %v27, %v31
    %vm34 = vcmask 261120
    %v36 = vsel %vm34, %v21, 0
    %v39 = vsel %vm34, %v22, 0
    %41 = vmatprep.subr.mxu0 0.0
    %42 = vmatpush1.msra.mxu0 0.0
    %43 = vmatprep.subr.mxu0 0.0
    %44 = vmatpush1.msra.mxu0 0.0
    %45 = vmatprep.subr.mxu0 0.0
    %46 = vmatpush1.msra.mxu0 0.0
    %47 = vmatprep.subr.mxu0 0.0
    %48 = vmatpush1.msra.mxu0 0.0
    %49 = vmatprep.subr.mxu0 0.0
    %50 = vmatpush1.msra.mxu0 0.0
    %51 = vmatprep.subr.mxu0 0.0
    %52 = vmatpush1.msra.mxu0 0.0
    %53 = vmatprep.subr.mxu0 0.0
    %54 = vmatpush1.msra.mxu0 0.0
    %55 = vmatprep.subr.mxu0 0.0
    %56 = vmatpush1.msra.mxu0 0.0
    %57 = vmatprep.subr.mxu0 0.0
    %58 = vmatpush1.msra.mxu0 0.0
    %59 = vmatprep.subr.mxu0 0.0
    %60 = vmatpush1.msra.mxu0 0.0
    %61 = vmatprep.subr.mxu0 0.0
    %62 = vmatpush1.msra.mxu0 0.0
    %63 = vmatprep.subr.mxu0 0.0
    %64 = vmatpush1.msra.mxu0 0.0
    %65 = vmatprep.subr.mxu0 0.0
    %66 = vmatpush1.msra.mxu0 %v26
    %67 = vmatprep.subr.mxu0 0.0
    %68 = vmatpush1.msra.mxu0 %v25
    %69 = vmatprep.subr.mxu0 0.0
    %70 = vmatpush1.msra.mxu0 %v24
    %71 = vmatprep.subr.mxu0 0.0
    %72 = vmatpush1.msra.mxu0 %v23
    %73 = vmatprep.subr.mxu0 0.0
    %74 = vmatpush2.msra.mxu0 0.0
    %75 = vmatprep.subr.mxu0 0.0
    %76 = vmatpush2.msra.mxu0 0.0
    %77 = vmatprep.subr.mxu0 0.0
    %78 = vmatpush2.msra.mxu0 0.0
    %79 = vmatprep.subr.mxu0 0.0
    %80 = vmatpush2.msra.mxu0 0.0
    %81 = vmatprep.subr.mxu0 0.0
    %82 = vmatpush2.msra.mxu0 0.0
    %83 = vmatprep.subr.mxu0 0.0
    %84 = vmatpush2.msra.mxu0 0.0
    %85 = vmatprep.subr.mxu0 0.0
    %86 = vmatpush2.msra.mxu0 0.0
    %87 = vmatprep.subr.mxu0 0.0
    %88 = vmatpush2.msra.mxu0 0.0
    %89 = vmatprep.subr.mxu0 0.0
    %90 = vmatpush2.msra.mxu0 0.0
    %91 = vmatprep.subr.mxu0 0.0
    %92 = vmatpush2.msra.mxu0 0.0
    %93 = vmatprep.subr.mxu0 0.0
    %94 = vmatpush2.msra.mxu0 0.0
    %95 = vmatprep.subr.mxu0 0.0
    %96 = vmatpush2.msra.mxu0 0.0
    %97 = vmatprep.subr.mxu0 0.0
    %98 = vmatpush2.msra.mxu0 0.0
    %99 = vmatprep.subr.mxu0 0.0
    %100 = vmatpush2.msra.mxu0 0.0
    %101 = vmatprep.subr.mxu0 0.0
    %102 = vmatpush2.msra.mxu0 0.0
    %103 = vmatprep.subr.mxu0 0.0
    %104 = vmatpush2.msra.mxu0 0.0
    %105 = vmatprep.mubr.f32.mxu0 0.0
    %106 = vmatmul.mubr.f32.gmra.mxu0 %v36
    %v107 = vpop.f32.mrf.mxu0
    %v108 = vadd.f32 %v32, %v107
    %v109 = vpop.f32.mrf.mxu0
    %110 = vmatprep.mubr.f32.mxu0 0.0
    %111 = vmatmul.mubr.f32.gmra.mxu0 %v39
    %v112 = vpop.f32.mrf.mxu0
    %v113 = vadd.f32 %v32, %v112
    %v114 = vpop.f32.mrf.mxu0
    %115 = vdwg.mxu0
    %v116 = vmul.f32 %v108, 0.5
    %v117 = vmul.f32 %v113, 0.5
    %v118 = vmul.f32 %v108, 0.70710677
    %v119 = vmul.f32 %v113, 0.70710677
    %v120 = verf.f32.pop %v118
    %v121 = verf.f32.pop %v119
    %v122 = vadd.f32 %v120, 1.0
    %v123 = vadd.f32 %v121, 1.0
    %v124 = vmul.f32 %v116, %v122
    %v125 = vmul.f32 %v117, %v123
    %v126 = vld [vmem:[%s3] sm:$0xff]
    %v127 = vld [vmem:[%s3 + $0x8] sm:$0xff]
    %v128 = vld [vmem:[%s3 + $0x10] sm:$0xff]
    %v129 = vld [vmem:[%s3 + $0x18] sm:$0xff]
    %v130 = vld [vmem:[%s3 + $0x20] sm:$0xff]
    %v131 = vld [vmem:[%s3 + $0x28] sm:$0xff]
    %v132 = vld [vmem:[%s3 + $0x30] sm:$0xff]
    %v133 = vld [vmem:[%s3 + $0x38] sm:$0xff]
    %v134 = vld [vmem:[%s3 + $0x40] sm:$0xff]
    %v135 = vld [vmem:[%s3 + $0x48] sm:$0xff]
    %v136 = vld [vmem:[%s3 + $0x50] sm:$0xff]
    %v137 = vld [vmem:[%s3 + $0x58] sm:$0xff]
    %v138 = vld [vmem:[%s3 + $0x60] sm:$0xff]
    %v139 = vld [vmem:[%s3 + $0x68] sm:$0xff]
    %v140 = vld [vmem:[%s3 + $0x70] sm:$0xff]
    %v141 = vld [vmem:[%s3 + $0x78] sm:$0xff]
    %142 = vmatprep.subr.mxu0 0.0
    %143 = vmatpush1.msra.mxu0 %v141
    %144 = vmatprep.subr.mxu0 0.0
    %145 = vmatpush1.msra.mxu0 %v140
    %146 = vmatprep.subr.mxu0 0.0
    %147 = vmatpush1.msra.mxu0 %v139
    %148 = vmatprep.subr.mxu0 0.0
    %149 = vmatpush1.msra.mxu0 %v138
    %150 = vmatprep.subr.mxu0 0.0
    %151 = vmatpush1.msra.mxu0 %v137
    %152 = vmatprep.subr.mxu0 0.0
    %153 = vmatpush1.msra.mxu0 %v136
    %154 = vmatprep.subr.mxu0 0.0
    %155 = vmatpush1.msra.mxu0 %v135
    %156 = vmatprep.subr.mxu0 0.0
    %157 = vmatpush1.msra.mxu0 %v134
    %158 = vmatprep.subr.mxu0 0.0
    %159 = vmatpush1.msra.mxu0 %v133
    %160 = vmatprep.subr.mxu0 0.0
    %161 = vmatpush1.msra.mxu0 %v132
    %162 = vmatprep.subr.mxu0 0.0
    %163 = vmatpush1.msra.mxu0 %v131
    %164 = vmatprep.subr.mxu0 0.0
    %165 = vmatpush1.msra.mxu0 %v130
    %166 = vmatprep.subr.mxu0 0.0
    %167 = vmatpush1.msra.mxu0 %v129
    %168 = vmatprep.subr.mxu0 0.0
    %169 = vmatpush1.msra.mxu0 %v128
    %170 = vmatprep.subr.mxu0 0.0
    %171 = vmatpush1.msra.mxu0 %v127
    %172 = vmatprep.subr.mxu0 0.0
    %173 = vmatpush1.msra.mxu0 %v126
    %174 = vmatprep.subr.mxu0 0.0
    %175 = vmatpush2.msra.mxu0 0.0
    %176 = vmatprep.subr.mxu0 0.0
    %177 = vmatpush2.msra.mxu0 0.0
    %178 = vmatprep.subr.mxu0 0.0
    %179 = vmatpush2.msra.mxu0 0.0
    %180 = vmatprep.subr.mxu0 0.0
    %181 = vmatpush2.msra.mxu0 0.0
    %182 = vmatprep.subr.mxu0 0.0
    %183 = vmatpush2.msra.mxu0 0.0
    %184 = vmatprep.subr.mxu0 0.0
    %185 = vmatpush2.msra.mxu0 0.0
    %186 = vmatprep.subr.mxu0 0.0
    %187 = vmatpush2.msra.mxu0 0.0
    %188 = vmatprep.subr.mxu0 0.0
    %189 = vmatpush2.msra.mxu0 0.0
    %190 = vmatprep.subr.mxu0 0.0
    %191 = vmatpush2.msra.mxu0 0.0
    %192 = vmatprep.subr.mxu0 0.0
    %193 = vmatpush2.msra.mxu0 0.0
    %194 = vmatprep.subr.mxu0 0.0
    %195 = vmatpush2.msra.mxu0 0.0
    %196 = vmatprep.subr.mxu0 0.0
    %197 = vmatpush2.msra.mxu0 0.0
    %198 = vmatprep.subr.mxu0 0.0
    %199 = vmatpush2.msra.mxu0 0.0
    %200 = vmatprep.subr.mxu0 0.0
    %201 = vmatpush2.msra.mxu0 0.0
    %202 = vmatprep.subr.mxu0 0.0
    %203 = vmatpush2.msra.mxu0 0.0
    %204 = vmatprep.subr.mxu0 0.0
    %205 = vmatpush2.msra.mxu0 0.0
    %206 = vmatprep.mubr.f32.mxu0 0.0
    %207 = vmatmul.mubr.f32.gmra.mxu0 %v124
    %v208 = vpop.f32.mrf.mxu0
    %v209 = vadd.f32 0.0, %v208
    %v210 = vpop.f32.mrf.mxu0
    %211 = vmatprep.mubr.f32.mxu0 0.0
    %212 = vmatmul.mubr.f32.gmra.mxu0 %v125
    %v213 = vpop.f32.mrf.mxu0
    %v214 = vadd.f32 0.0, %v213
    %v215 = vpop.f32.mrf.mxu0
    %216 = vdwg.mxu0
    %p217 = scmp.eq.s32.totalorder 0, 0
    // Predicated region
    $region22: #{tpu_custom_call.1} parent=1 // pred_check
      %p218 = pneg %p217
    $region23: #{tpu_custom_call.1} parent=1 // pred_check_branch
      %220 = sbr.rel (%p218) target = $region25
    $region24: #{tpu_custom_call.1} parent=1 // pred_region
      %v221 = vld [vmem:[%s4] sm:$0x1]
      %v223 = vlaneseq
      %v224 = vshrl.u32 %v223, 7
      %v225 = vsub.s32 0, %v224
      %v226 = vrot.slane %v221, %v225
      %v228 = vadd.f32 %v209, %v226
      %v229 = vadd.f32 %v214, %v226
      %230 = vst.msk [vmem:[#allocation2] sm:$0xff] %vm34, %v228
      %231 = vst.msk [vmem:[#allocation2 + $0x8] sm:$0xff] %vm34, %v229
    $region25: #{tpu_custom_call.1} parent=1 // pred_fallthru
      _
    %p232 = scmp.gt.s32.totalorder 0, 0
    // Predicated region
    $region26: #{tpu_custom_call.1} parent=1 // pred_check
      %p233 = pneg %p232
    $region27: #{tpu_custom_call.1} parent=1 // pred_check_branch
      %235 = sbr.rel (%p233) target = $region29
    $region28: #{tpu_custom_call.1} parent=1 // pred_region
      %v236 = vld [vmem:[#allocation2] sm:$0xff]
      %v237 = vld [vmem:[#allocation2 + $0x8] sm:$0xff]
      %v238 = vadd.f32 %v236, %v209
      %v239 = vadd.f32 %v237, %v214
      %240 = vst.msk [vmem:[#allocation2] sm:$0xff] %vm34, %v238
      %241 = vst.msk [vmem:[#allocation2 + $0x8] sm:$0xff] %vm34, %v239
    $region29: #{tpu_custom_call.1} parent=1 // pred_fallthru
      _
    // Predicated region
    $region30: #{tpu_custom_call.1} parent=1 // pred_check
      %p242 = pneg %p217
    $region31: #{tpu_custom_call.1} parent=1 // pred_check_branch
      %244 = sbr.rel (%p242) target = $region33
    $region32: #{tpu_custom_call.1} parent=1 // pred_region
      %v245 = vld [vmem:[#allocation2] sm:$0xff]
      %v246 = vld [vmem:[#allocation2 + $0x8] sm:$0xff]
      %247 = vst.msk [vmem:[#allocation3] sm:$0xff] %vm34, %v245
      %248 = vst.msk [vmem:[#allocation3 + $0x8] sm:$0xff] %vm34, %v246
    $region33: #{tpu_custom_call.1} parent=1 // pred_fallthru
      _
    // Predicated region
    $region34: #{tpu_custom_call.1} parent=1 // pred_check
      _
    $region35: #{tpu_custom_call.1} parent=1 // pred_check_branch
      %250 = sbr.rel (0) target = $region37
    $region36: #{tpu_custom_call.1} parent=1 // pred_region
      %s252 = ssub.s32 256, 256
      %253 = vsyncadd [#allocation4], %s252
      %s254 = sshll.u32 [#allocation3], 4
      %s255 = int_to_ptr.vmem [resolvable:$true] %s254
      %260 = dma.vmem_to_hbm [thread:$0]  %s255, 256, %s5, [#allocation4], 128, 128, 8
    $region37: #{tpu_custom_call.1} parent=1 // pred_fallthru
      _
    // Predicated region
    $region38: #{tpu_custom_call.1} parent=1 // pred_check
      _
    $region39: #{tpu_custom_call.1} parent=1 // pred_check_branch
      %262 = sbr.rel (0) target = $region41
    $region40: #{tpu_custom_call.1} parent=1 // pred_region
      %263 = dma.done [#allocation4], 256
    $region41: #{tpu_custom_call.1} parent=1 // pred_fallthru
      _
    %264 = vsyncpa [#allocation4], 1

// kernel: tpu_custom_call.1
$region0: #{tpu_custom_call.1}
  #allocation0 [shape = 'u32[]', space=smem, size = 0x4, offset = 0x4, fixed_abs, tag = 'smem constant byte address 0x4 - core index']
  #allocation1 [shape = 'u32[144,128]{1,0:T(1,128)}', space=vmem, size = 0x12000, scoped, tag = 'internal scratch']
  #allocation2 [shape = 'f32[16,32]{1,0:T(8,128)}', space=vmem, size = 0x2000, scoped, tag = 'scratch operand']
  %s0 = inlined_call_operand.vmem [shape: f32[16,32], index: 0, kind: input, shape index: {}]
  %s1 = inlined_call_operand.vmem [shape: f32[1,32,128], index: 1, kind: input, shape index: {}]
  %s2 = inlined_call_operand.vmem [shape: f32[1,128], index: 2, kind: input, shape index: {}]
  %s3 = inlined_call_operand.vmem [shape: f32[128,32], index: 3, kind: input, shape index: {}]
  %s4 = inlined_call_operand.vmem [shape: f32[1,32], index: 4, kind: input, shape index: {}]
  %s5 = inlined_call_operand.hbm [shape: f32[16,32], index: 5, kind: output, shape index: {}]
  %s6 = sld [smem:[#allocation0]]
  $region42: #{tpu_custom_call.1} parent=0
    _
  %s8 = ssub.s32 1, %s6
  %s9 = scalar_select 0, %s8, %s6
  $region1: #{tpu_custom_call.1} parent=0
    #allocation3 [shape = 'u8[8192]{0}', space=vmem, size = 0x2000, scoped, tag = 'output window, operand 0, single buffered']
    #allocation4 [shape = 's32[1]{0}', space=sflag, size = 0x4, scoped, tag = 'scoped memory for tpu_custom_call.1']
    %10 = vsyncpa [#allocation4], 0
    // Predicated region
    $region2: #{tpu_custom_call.1} parent=1 // pred_check
      _
    $region3: #{tpu_custom_call.1} parent=1 // pred_check_branch
      %12 = sbr.rel (0) target = $region5
    $region4: #{tpu_custom_call.1} parent=1 // pred_region
      _
    $region5: #{tpu_custom_call.1} parent=1 // pred_fallthru
      _
    // Predicated region
    $region6: #{tpu_custom_call.1} parent=1 // pred_check
      _
    $region7: #{tpu_custom_call.1} parent=1 // pred_check_branch
      %14 = sbr.rel (0) target = $region9
    $region8: #{tpu_custom_call.1} parent=1 // pred_region
      _
    $region9: #{tpu_custom_call.1} parent=1 // pred_fallthru
      _
    // Predicated region
    $region10: #{tpu_custom_call.1} parent=1 // pred_check
      _
    $region11: #{tpu_custom_call.1} parent=1 // pred_check_branch
      %16 = sbr.rel (0) target = $region13
    $region12: #{tpu_custom_call.1} parent=1 // pred_region
      _
    $region13: #{tpu_custom_call.1} parent=1 // pred_fallthru
      _
    // Predicated region
    $region14: #{tpu_custom_call.1} parent=1 // pred_check
      _
    $region15: #{tpu_custom_call.1} parent=1 // pred_check_branch
      %18 = sbr.rel (0) target = $region17
    $region16: #{tpu_custom_call.1} parent=1 // pred_region
      _
    $region17: #{tpu_custom_call.1} parent=1 // pred_fallthru
      _
    // Predicated region
    $region18: #{tpu_custom_call.1} parent=1 // pred_check
      _
    $region19: #{tpu_custom_call.1} parent=1 // pred_check_branch
      %20 = sbr.rel (0) target = $region21
    $region20: #{tpu_custom_call.1} parent=1 // pred_region
      _
    $region21: #{tpu_custom_call.1} parent=1 // pred_fallthru
      _
    %v21 = vld [vmem:[%s0] sm:$0xff]
    %v22 = vld [vmem:[%s0 + $0x8] sm:$0xff]
    %v23 = vld [vmem:[%s1] sm:$0xff]
    %v24 = vld [vmem:[%s1 + $0x8] sm:$0xff]
    %v25 = vld [vmem:[%s1 + $0x10] sm:$0xff]
    %v26 = vld [vmem:[%s1 + $0x18] sm:$0xff]
    %v27 = vld [vmem:[%s2] sm:$0x1]
    %v29 = vlaneseq
    %v30 = vshrl.u32 %v29, 7
    %v31 = vsub.s32 0, %v30
    %v32 = vrot.slane %v27, %v31
    %vm34 = vcmask 261120
    %v36 = vsel %vm34, %v21, 0
    %v39 = vsel %vm34, %v22, 0
    %41 = vmatprep.subr.mxu0 0.0
    %42 = vmatpush1.msra.mxu0 0.0
    %43 = vmatprep.subr.mxu0 0.0
    %44 = vmatpush1.msra.mxu0 0.0
    %45 = vmatprep.subr.mxu0 0.0
    %46 = vmatpush1.msra.mxu0 0.0
    %47 = vmatprep.subr.mxu0 0.0
    %48 = vmatpush1.msra.mxu0 0.0
    %49 = vmatprep.subr.mxu0 0.0
    %50 = vmatpush1.msra.mxu0 0.0
    %51 = vmatprep.subr.mxu0 0.0
    %52 = vmatpush1.msra.mxu0 0.0
    %53 = vmatprep.subr.mxu0 0.0
    %54 = vmatpush1.msra.mxu0 0.0
    %55 = vmatprep.subr.mxu0 0.0
    %56 = vmatpush1.msra.mxu0 0.0
    %57 = vmatprep.subr.mxu0 0.0
    %58 = vmatpush1.msra.mxu0 0.0
    %59 = vmatprep.subr.mxu0 0.0
    %60 = vmatpush1.msra.mxu0 0.0
    %61 = vmatprep.subr.mxu0 0.0
    %62 = vmatpush1.msra.mxu0 0.0
    %63 = vmatprep.subr.mxu0 0.0
    %64 = vmatpush1.msra.mxu0 0.0
    %65 = vmatprep.subr.mxu0 0.0
    %66 = vmatpush1.msra.mxu0 %v26
    %67 = vmatprep.subr.mxu0 0.0
    %68 = vmatpush1.msra.mxu0 %v25
    %69 = vmatprep.subr.mxu0 0.0
    %70 = vmatpush1.msra.mxu0 %v24
    %71 = vmatprep.subr.mxu0 0.0
    %72 = vmatpush1.msra.mxu0 %v23
    %73 = vmatprep.subr.mxu0 0.0
    %74 = vmatpush2.msra.mxu0 0.0
    %75 = vmatprep.subr.mxu0 0.0
    %76 = vmatpush2.msra.mxu0 0.0
    %77 = vmatprep.subr.mxu0 0.0
    %78 = vmatpush2.msra.mxu0 0.0
    %79 = vmatprep.subr.mxu0 0.0
    %80 = vmatpush2.msra.mxu0 0.0
    %81 = vmatprep.subr.mxu0 0.0
    %82 = vmatpush2.msra.mxu0 0.0
    %83 = vmatprep.subr.mxu0 0.0
    %84 = vmatpush2.msra.mxu0 0.0
    %85 = vmatprep.subr.mxu0 0.0
    %86 = vmatpush2.msra.mxu0 0.0
    %87 = vmatprep.subr.mxu0 0.0
    %88 = vmatpush2.msra.mxu0 0.0
    %89 = vmatprep.subr.mxu0 0.0
    %90 = vmatpush2.msra.mxu0 0.0
    %91 = vmatprep.subr.mxu0 0.0
    %92 = vmatpush2.msra.mxu0 0.0
    %93 = vmatprep.subr.mxu0 0.0
    %94 = vmatpush2.msra.mxu0 0.0
    %95 = vmatprep.subr.mxu0 0.0
    %96 = vmatpush2.msra.mxu0 0.0
    %97 = vmatprep.subr.mxu0 0.0
    %98 = vmatpush2.msra.mxu0 0.0
    %99 = vmatprep.subr.mxu0 0.0
    %100 = vmatpush2.msra.mxu0 0.0
    %101 = vmatprep.subr.mxu0 0.0
    %102 = vmatpush2.msra.mxu0 0.0
    %103 = vmatprep.subr.mxu0 0.0
    %104 = vmatpush2.msra.mxu0 0.0
    %105 = vmatprep.mubr.f32.mxu0 0.0
    %106 = vmatmul.mubr.f32.gmra.mxu0 %v36
    %v107 = vpop.f32.mrf.mxu0
    %v108 = vadd.f32 %v32, %v107
    %v109 = vpop.f32.mrf.mxu0
    %110 = vmatprep.mubr.f32.mxu0 0.0
    %111 = vmatmul.mubr.f32.gmra.mxu0 %v39
    %v112 = vpop.f32.mrf.mxu0
    %v113 = vadd.f32 %v32, %v112
    %v114 = vpop.f32.mrf.mxu0
    %115 = vdwg.mxu0
    %v116 = vmul.f32 %v108, 0.5
    %v117 = vmul.f32 %v113, 0.5
    %v118 = vmul.f32 %v108, 0.70710677
    %v119 = vmul.f32 %v113, 0.70710677
    %v120 = verf.f32.pop %v118
    %v121 = verf.f32.pop %v119
    %v122 = vadd.f32 %v120, 1.0
    %v123 = vadd.f32 %v121, 1.0
    %v124 = vmul.f32 %v116, %v122
    %v125 = vmul.f32 %v117, %v123
    %v126 = vld [vmem:[%s3] sm:$0xff]
    %v127 = vld [vmem:[%s3 + $0x8] sm:$0xff]
    %v128 = vld [vmem:[%s3 + $0x10] sm:$0xff]
    %v129 = vld [vmem:[%s3 + $0x18] sm:$0xff]
    %v130 = vld [vmem:[%s3 + $0x20] sm:$0xff]
    %v131 = vld [vmem:[%s3 + $0x28] sm:$0xff]
    %v132 = vld [vmem:[%s3 + $0x30] sm:$0xff]
    %v133 = vld [vmem:[%s3 + $0x38] sm:$0xff]
    %v134 = vld [vmem:[%s3 + $0x40] sm:$0xff]
    %v135 = vld [vmem:[%s3 + $0x48] sm:$0xff]
    %v136 = vld [vmem:[%s3 + $0x50] sm:$0xff]
    %v137 = vld [vmem:[%s3 + $0x58] sm:$0xff]
    %v138 = vld [vmem:[%s3 + $0x60] sm:$0xff]
    %v139 = vld [vmem:[%s3 + $0x68] sm:$0xff]
    %v140 = vld [vmem:[%s3 + $0x70] sm:$0xff]
    %v141 = vld [vmem:[%s3 + $0x78] sm:$0xff]
    %142 = vmatprep.subr.mxu0 0.0
    %143 = vmatpush1.msra.mxu0 %v141
    %144 = vmatprep.subr.mxu0 0.0
    %145 = vmatpush1.msra.mxu0 %v140
    %146 = vmatprep.subr.mxu0 0.0
    %147 = vmatpush1.msra.mxu0 %v139
    %148 = vmatprep.subr.mxu0 0.0
    %149 = vmatpush1.msra.mxu0 %v138
    %150 = vmatprep.subr.mxu0 0.0
    %151 = vmatpush1.msra.mxu0 %v137
    %152 = vmatprep.subr.mxu0 0.0
    %153 = vmatpush1.msra.mxu0 %v136
    %154 = vmatprep.subr.mxu0 0.0
    %155 = vmatpush1.msra.mxu0 %v135
    %156 = vmatprep.subr.mxu0 0.0
    %157 = vmatpush1.msra.mxu0 %v134
    %158 = vmatprep.subr.mxu0 0.0
    %159 = vmatpush1.msra.mxu0 %v133
    %160 = vmatprep.subr.mxu0 0.0
    %161 = vmatpush1.msra.mxu0 %v132
    %162 = vmatprep.subr.mxu0 0.0
    %163 = vmatpush1.msra.mxu0 %v131
    %164 = vmatprep.subr.mxu0 0.0
    %165 = vmatpush1.msra.mxu0 %v130
    %166 = vmatprep.subr.mxu0 0.0
    %167 = vmatpush1.msra.mxu0 %v129
    %168 = vmatprep.subr.mxu0 0.0
    %169 = vmatpush1.msra.mxu0 %v128
    %170 = vmatprep.subr.mxu0 0.0
    %171 = vmatpush1.msra.mxu0 %v127
    %172 = vmatprep.subr.mxu0 0.0
    %173 = vmatpush1.msra.mxu0 %v126
    %174 = vmatprep.subr.mxu0 0.0
    %175 = vmatpush2.msra.mxu0 0.0
    %176 = vmatprep.subr.mxu0 0.0
    %177 = vmatpush2.msra.mxu0 0.0
    %178 = vmatprep.subr.mxu0 0.0
    %179 = vmatpush2.msra.mxu0 0.0
    %180 = vmatprep.subr.mxu0 0.0
    %181 = vmatpush2.msra.mxu0 0.0
    %182 = vmatprep.subr.mxu0 0.0
    %183 = vmatpush2.msra.mxu0 0.0
    %184 = vmatprep.subr.mxu0 0.0
    %185 = vmatpush2.msra.mxu0 0.0
    %186 = vmatprep.subr.mxu0 0.0
    %187 = vmatpush2.msra.mxu0 0.0
    %188 = vmatprep.subr.mxu0 0.0
    %189 = vmatpush2.msra.mxu0 0.0
    %190 = vmatprep.subr.mxu0 0.0
    %191 = vmatpush2.msra.mxu0 0.0
    %192 = vmatprep.subr.mxu0 0.0
    %193 = vmatpush2.msra.mxu0 0.0
    %194 = vmatprep.subr.mxu0 0.0
    %195 = vmatpush2.msra.mxu0 0.0
    %196 = vmatprep.subr.mxu0 0.0
    %197 = vmatpush2.msra.mxu0 0.0
    %198 = vmatprep.subr.mxu0 0.0
    %199 = vmatpush2.msra.mxu0 0.0
    %200 = vmatprep.subr.mxu0 0.0
    %201 = vmatpush2.msra.mxu0 0.0
    %202 = vmatprep.subr.mxu0 0.0
    %203 = vmatpush2.msra.mxu0 0.0
    %204 = vmatprep.subr.mxu0 0.0
    %205 = vmatpush2.msra.mxu0 0.0
    %206 = vmatprep.mubr.f32.mxu0 0.0
    %207 = vmatmul.mubr.f32.gmra.mxu0 %v124
    %v208 = vpop.f32.mrf.mxu0
    %v209 = vadd.f32 0.0, %v208
    %v210 = vpop.f32.mrf.mxu0
    %211 = vmatprep.mubr.f32.mxu0 0.0
    %212 = vmatmul.mubr.f32.gmra.mxu0 %v125
    %v213 = vpop.f32.mrf.mxu0
    %v214 = vadd.f32 0.0, %v213
    %v215 = vpop.f32.mrf.mxu0
    %216 = vdwg.mxu0
    %p217 = scmp.eq.s32.totalorder 0, 0
    // Predicated region
    $region22: #{tpu_custom_call.1} parent=1 // pred_check
      %p218 = pneg %p217
    $region23: #{tpu_custom_call.1} parent=1 // pred_check_branch
      %220 = sbr.rel (%p218) target = $region25
    $region24: #{tpu_custom_call.1} parent=1 // pred_region
      %v221 = vld [vmem:[%s4] sm:$0x1]
      %v223 = vlaneseq
      %v224 = vshrl.u32 %v223, 7
      %v225 = vsub.s32 0, %v224
      %v226 = vrot.slane %v221, %v225
      %v228 = vadd.f32 %v209, %v226
      %v229 = vadd.f32 %v214, %v226
      %230 = vst.msk [vmem:[#allocation2] sm:$0xff] %vm34, %v228
      %231 = vst.msk [vmem:[#allocation2 + $0x8] sm:$0xff] %vm34, %v229
    $region25: #{tpu_custom_call.1} parent=1 // pred_fallthru
      _
    %p232 = scmp.gt.s32.totalorder 0, 0
    // Predicated region
    $region26: #{tpu_custom_call.1} parent=1 // pred_check
      %p233 = pneg %p232
    $region27: #{tpu_custom_call.1} parent=1 // pred_check_branch
      %235 = sbr.rel (%p233) target = $region29
    $region28: #{tpu_custom_call.1} parent=1 // pred_region
      %v236 = vld [vmem:[#allocation2] sm:$0xff]
      %v237 = vld [vmem:[#allocation2 + $0x8] sm:$0xff]
      %v238 = vadd.f32 %v236, %v209
      %v239 = vadd.f32 %v237, %v214
      %240 = vst.msk [vmem:[#allocation2] sm:$0xff] %vm34, %v238
      %241 = vst.msk [vmem:[#allocation2 + $0x8] sm:$0xff] %vm34, %v239
    $region29: #{tpu_custom_call.1} parent=1 // pred_fallthru
      _
    // Predicated region
    $region30: #{tpu_custom_call.1} parent=1 // pred_check
      %p242 = pneg %p217
    $region31: #{tpu_custom_call.1} parent=1 // pred_check_branch
      %244 = sbr.rel (%p242) target = $region33
    $region32: #{tpu_custom_call.1} parent=1 // pred_region
      %v245 = vld [vmem:[#allocation2] sm:$0xff]
      %v246 = vld [vmem:[#allocation2 + $0x8] sm:$0xff]
      %247 = vst.msk [vmem:[#allocation3] sm:$0xff] %vm34, %v245
      %248 = vst.msk [vmem:[#allocation3 + $0x8] sm:$0xff] %vm34, %v246
    $region33: #{tpu_custom_call.1} parent=1 // pred_fallthru
      _
    // Predicated region
    $region34: #{tpu_custom_call.1} parent=1 // pred_check
      _
    $region35: #{tpu_custom_call.1} parent=1 // pred_check_branch
      %250 = sbr.rel (0) target = $region37
    $region36: #{tpu_custom_call.1} parent=1 // pred_region
      %s252 = ssub.s32 256, 256
      %253 = vsyncadd [#allocation4], %s252
      %s254 = sshll.u32 [#allocation3], 4
      %s255 = int_to_ptr.vmem [resolvable:$true] %s254
      %260 = dma.vmem_to_hbm [thread:$0]  %s255, 256, %s5, [#allocation4], 128, 128, 8
    $region37: #{tpu_custom_call.1} parent=1 // pred_fallthru
      _
    // Predicated region
    $region38: #{tpu_custom_call.1} parent=1 // pred_check
      _
    $region39: #{tpu_custom_call.1} parent=1 // pred_check_branch
      %262 = sbr.rel (0) target = $region41
    $region40: #{tpu_custom_call.1} parent=1 // pred_region
      %263 = dma.done [#allocation4], 256
    $region41: #{tpu_custom_call.1} parent=1 // pred_fallthru
      _
    %264 = vsyncpa [#allocation4], 1

</llo_original>
